<compile_context>
chip_gen: v7x
topology: tpu7x:2x2x1
jax: 0.10.0
libtpu: 0.0.40
codegen_flags: <defaults>
</compile_context>

<pallas_src>
import functools
import math

import jax
import jax.numpy as jnp
from jax.experimental import pallas as pl
from jax.experimental.pallas import tpu as pltpu


def _arcface_kernel(x_ref, w_ref, inv_norm_ref, cosm_ref, sinm_ref,
                    out_ref, acc_ref, *, scale_factor):
    s = pl.program_id(1)

    # Cosine similarities for this (identity tile, subclass): bf16 MXU matmul
    # with f32 accumulation, then per-column rescale by precomputed 1/||w_col||.
    c = jnp.dot(x_ref[...], w_ref[...], preferred_element_type=jnp.float32)
    c = c * inv_norm_ref[...]                                  # (B,TN) * (1,TN)

    @pl.when(s == 0)
    def _():
        acc_ref[...] = c

    @pl.when(s != 0)
    def _():
        acc_ref[...] = jnp.maximum(acc_ref[...], c)

    @pl.when(s == pl.num_programs(1) - 1)
    def _():
        cm = acc_ref[...]                                      # (B, TN)
        # cos(acos(c) + m) = c*cos(m) - sqrt(1-c^2)*sin(m); theta in [0, pi].
        # |c| > 1 from rounding gives NaN, matching torch.acos semantics.
        sin_theta = jnp.sqrt(1.0 - cm * cm)
        logits = (cm * cosm_ref[...] - sin_theta * sinm_ref[...]) * scale_factor
        # Softmax over dim=0 (batch axis), exactly as the reference module.
        mx = jnp.max(logits, axis=0, keepdims=True)
        e = jnp.exp(logits - mx)
        denom = jnp.sum(e, axis=0, keepdims=True)
        out_ref[...] = (e * pl.reciprocal(denom, approx=True)).astype(out_ref.dtype)


def _round_up(x, m):
    return ((x + m - 1) // m) * m


def arcface_forward(input_batch, target_batch, w, *, margin=0.5,
                    scale_factor=64.0, tile_n=512,
                    compute_dtype=jnp.bfloat16):
    """input_batch: (B, E); target_batch: (B, I) one-hot; w: (E, I, S)."""
    B, E = input_batch.shape
    E2, I, S = w.shape
    assert E == E2 and target_batch.shape == (B, I)

    # Identity axis padding: lane-dense (multiple of 128) and tile-divisible.
    i_pad = _round_up(I, 128)
    tn = min(int(tile_n), i_pad)
    i_pad = _round_up(i_pad, tn)

    # Per-column L2 norm over the FULL embedding axis (wrapper glue; the kernel
    # rescales the matmul result instead of normalising w elementwise).
    w_f32 = w.astype(jnp.float32)
    col_norm = jnp.sqrt(jnp.sum(w_f32 * w_f32, axis=0))        # (I, S)
    inv_norm = 1.0 / jnp.maximum(col_norm, 1e-12)              # F.normalize eps
    inv_norm = jnp.transpose(inv_norm, (1, 0))[:, None, :]     # (S, 1, I)
    inv_norm = jnp.pad(inv_norm, ((0, 0), (0, 0), (0, i_pad - I)))

    # Weights: (E, I, S) -> (S, E, I_pad), bf16 into the MXU.
    w_k = jnp.transpose(w, (2, 0, 1)).astype(compute_dtype)    # (S, E, I)
    w_k = jnp.pad(w_k, ((0, 0), (0, 0), (0, i_pad - I)))

    x_k = input_batch.astype(compute_dtype)                    # (B, E)

    # Additive-margin cos/sin (cheap elementwise glue), padded lane-dense.
    target_p = jnp.pad(target_batch.astype(jnp.float32),
                       ((0, 0), (0, i_pad - I)))
    margins = target_p * margin
    cos_m = jnp.cos(margins)
    sin_m = jnp.sin(margins)

    grid = (i_pad // tn, S)
    out = pl.pallas_call(
        functools.partial(_arcface_kernel, scale_factor=float(scale_factor)),
        out_shape=jax.ShapeDtypeStruct((B, i_pad), jnp.float32),
        grid=grid,
        in_specs=[
            pl.BlockSpec((B, E), lambda i, s: (0, 0)),            # x (resident)
            pl.BlockSpec((None, E, tn), lambda i, s: (s, 0, i)),  # w tile
            pl.BlockSpec((None, 1, tn), lambda i, s: (s, 0, i)),  # 1/||w_col||
            pl.BlockSpec((B, tn), lambda i, s: (0, i)),           # cos(margin)
            pl.BlockSpec((B, tn), lambda i, s: (0, i)),           # sin(margin)
        ],
        out_specs=pl.BlockSpec((B, tn), lambda i, s: (0, i)),
        scratch_shapes=[pltpu.VMEM((B, tn), jnp.float32)],        # subclass-max acc
        compiler_params=pltpu.CompilerParams(
            dimension_semantics=("parallel", "arbitrary"),
            vmem_limit_bytes=64 * 1024 * 1024,
        ),
    )(x_k, w_k, inv_norm, cos_m, sin_m)

    return out[:, :I]


if __name__ == "__main__":
    B, E, I, S = 8, 64, 16, 2      # batch, n_embeddings, n_identities, n_subclasses

    key = jax.random.PRNGKey(0)
    k_w, k_x, k_y = jax.random.split(key, 3)

    # Deterministic xavier_uniform init for w of shape (E, I, S):
    # fan_in = I*S, fan_out = E*S, bound = sqrt(6 / (fan_in + fan_out)).
    bound = math.sqrt(6.0 / (I * S + E * S))
    w = jax.random.uniform(k_w, (E, I, S), jnp.float32, -bound, bound)

    # L2-normalised embeddings (as ArcFace embeddings typically are).
    x = jax.random.normal(k_x, (B, E), jnp.float32)
    x = x / jnp.linalg.norm(x, axis=1, keepdims=True)

    # One-hot targets (B, I).
    labels = jax.random.randint(k_y, (B,), 0, I)
    target = jax.nn.one_hot(labels, I, dtype=jnp.float32)

    out = arcface_forward(x, target, w, margin=0.5, scale_factor=64.0)
    jax.block_until_ready(out)
    assert out.shape == (B, I)
    assert bool(jnp.all(jnp.isfinite(out)))
    print("KERNEL_OK")
</pallas_src>

<mosaic_0001>
module attributes {stable_mosaic.version = 11 : i64} {
  func.func @_arcface_kernel(%arg0: i32, %arg1: i32, %arg2: memref<8x64xbf16, #tpu.memory_space<vmem>>, %arg3: memref<1x64x128xbf16, #tpu.memory_space<vmem>>, %arg4: memref<1x1x128xf32, #tpu.memory_space<vmem>>, %arg5: memref<8x128xf32, #tpu.memory_space<vmem>>, %arg6: memref<8x128xf32, #tpu.memory_space<vmem>>, %arg7: memref<8x128xf32, #tpu.memory_space<vmem>>, %arg8: memref<8x128xf32, #tpu.memory_space<vmem>>) attributes {dimension_semantics = [#tpu.dimension_semantics<parallel>, #tpu.dimension_semantics<arbitrary>], iteration_bounds = array<i64: 1, 2>, scalar_prefetch = 0 : i64, scratch_operands = 1 : i64, tpu.core_type = #tpu.core_type<tc>, window_params = [{pipeline_mode = #tpu.pipeline_mode<synchronous>, transform_indices = @transform_0, window_bounds = array<i64: 8, 64>}, {transform_indices = @transform_1, window_bounds = array<i64: 1, 64, 128>}, {transform_indices = @transform_2, window_bounds = array<i64: 1, 1, 128>}, {transform_indices = @transform_3, window_bounds = array<i64: 8, 128>}, {transform_indices = @transform_4, window_bounds = array<i64: 8, 128>}, {transform_indices = @transform_5, window_bounds = array<i64: 8, 128>}]} {
    %c0 = arith.constant 0 : index
    %c0_0 = arith.constant 0 : index
    %0 = vector.load %arg2[%c0, %c0_0] : memref<8x64xbf16, #tpu.memory_space<vmem>>, vector<8x64xbf16>
    %c0_1 = arith.constant 0 : index
    %c0_2 = arith.constant 0 : index
    %c0_3 = arith.constant 0 : index
    %1 = vector.load %arg3[%c0_1, %c0_2, %c0_3] : memref<1x64x128xbf16, #tpu.memory_space<vmem>>, vector<1x64x128xbf16>
    %2 = vector.shape_cast %1 : vector<1x64x128xbf16> to vector<64x128xbf16>
    %cst = arith.constant dense<0.000000e+00> : vector<8x128xf32>
    %3 = tpu.matmul %0, %2, %cst {dimension_numbers = #tpu.dot_dimension_numbers<[1], [0], [0], [1], [0, 0, 1, 1], [], []>} : vector<8x64xbf16>, vector<64x128xbf16>, vector<8x128xf32> -> vector<8x128xf32>
    %c0_4 = arith.constant 0 : index
    %c0_5 = arith.constant 0 : index
    %c0_6 = arith.constant 0 : index
    %4 = vector.load %arg4[%c0_4, %c0_5, %c0_6] : memref<1x1x128xf32, #tpu.memory_space<vmem>>, vector<1x1x128xf32>
    %5 = vector.shape_cast %4 : vector<1x1x128xf32> to vector<1x128xf32>
    %6 = vector.broadcast %5 : vector<1x128xf32> to vector<8x128xf32>
    %7 = arith.mulf %3, %6 : vector<8x128xf32>
    %c0_i32 = arith.constant 0 : i32
    %8 = arith.cmpi eq, %arg1, %c0_i32 : i32
    %9 = arith.extui %8 : i1 to i32
    %c0_i32_7 = arith.constant 0 : i32
    %10 = arith.cmpi ne, %9, %c0_i32_7 : i32
    scf.if %10 {
      %c0_11 = arith.constant 0 : index
      %c0_12 = arith.constant 0 : index
      %17 = vector.load %arg8[%c0_11, %c0_12] : memref<8x128xf32, #tpu.memory_space<vmem>>, vector<8x128xf32>
      tpu.vector_store %arg8[%c0_11, %c0_12], %7 {strides = array<i32>} : memref<8x128xf32, #tpu.memory_space<vmem>>, vector<8x128xf32>,
    } else {
    }
    %c0_i32_8 = arith.constant 0 : i32
    %11 = arith.cmpi ne, %arg1, %c0_i32_8 : i32
    %12 = arith.extui %11 : i1 to i32
    %c0_i32_9 = arith.constant 0 : i32
    %13 = arith.cmpi ne, %12, %c0_i32_9 : i32
    scf.if %13 {
      %c0_11 = arith.constant 0 : index
      %c0_12 = arith.constant 0 : index
      %17 = vector.load %arg8[%c0_11, %c0_12] : memref<8x128xf32, #tpu.memory_space<vmem>>, vector<8x128xf32>
      %18 = arith.maximumf %17, %7 : vector<8x128xf32>
      %c0_13 = arith.constant 0 : index
      %c0_14 = arith.constant 0 : index
      %19 = vector.load %arg8[%c0_13, %c0_14] : memref<8x128xf32, #tpu.memory_space<vmem>>, vector<8x128xf32>
      tpu.vector_store %arg8[%c0_13, %c0_14], %18 {strides = array<i32>} : memref<8x128xf32, #tpu.memory_space<vmem>>, vector<8x128xf32>,
    } else {
    }
    %c1_i32 = arith.constant 1 : i32
    %14 = arith.cmpi eq, %arg1, %c1_i32 : i32
    %15 = arith.extui %14 : i1 to i32
    %c0_i32_10 = arith.constant 0 : i32
    %16 = arith.cmpi ne, %15, %c0_i32_10 : i32
    scf.if %16 {
      %c0_11 = arith.constant 0 : index
      %c0_12 = arith.constant 0 : index
      %17 = vector.load %arg8[%c0_11, %c0_12] : memref<8x128xf32, #tpu.memory_space<vmem>>, vector<8x128xf32>
      %18 = arith.mulf %17, %17 : vector<8x128xf32>
      %cst_13 = arith.constant 1.000000e+00 : f32
      %19 = vector.broadcast %cst_13 : f32 to vector<8x128xf32>
      %20 = arith.subf %19, %18 : vector<8x128xf32>
      %21 = math.sqrt %20 : vector<8x128xf32>
      %c0_14 = arith.constant 0 : index
      %c0_15 = arith.constant 0 : index
      %22 = vector.load %arg5[%c0_14, %c0_15] : memref<8x128xf32, #tpu.memory_space<vmem>>, vector<8x128xf32>
      %23 = arith.mulf %17, %22 : vector<8x128xf32>
      %c0_16 = arith.constant 0 : index
      %c0_17 = arith.constant 0 : index
      %24 = vector.load %arg6[%c0_16, %c0_17] : memref<8x128xf32, #tpu.memory_space<vmem>>, vector<8x128xf32>
      %25 = arith.mulf %21, %24 : vector<8x128xf32>
      %26 = arith.subf %23, %25 : vector<8x128xf32>
      %cst_18 = arith.constant 6.400000e+01 : f32
      %27 = vector.broadcast %cst_18 : f32 to vector<8x128xf32>
      %28 = arith.mulf %26, %27 : vector<8x128xf32>
      %cst_19 = arith.constant dense<0xFF800000> : vector<128xf32>
      %29 = vector.multi_reduction <maximumf>, %28, %cst_19 [0] : vector<8x128xf32> to vector<128xf32>
      %30 = vector.shape_cast %29 : vector<128xf32> to vector<1x128xf32>
      %31 = vector.broadcast %30 : vector<1x128xf32> to vector<8x128xf32>
      %32 = arith.subf %28, %31 : vector<8x128xf32>
      %33 = math.exp %32 : vector<8x128xf32>
      %cst_20 = arith.constant dense<0.000000e+00> : vector<128xf32>
      %34 = vector.multi_reduction <add>, %33, %cst_20 [0] : vector<8x128xf32> to vector<128xf32>
      %35 = vector.shape_cast %34 : vector<128xf32> to vector<1x128xf32>
      %36 = tpu.reciprocal %35 {approx = true} : vector<1x128xf32> -> vector<1x128xf32>
      %37 = vector.broadcast %36 : vector<1x128xf32> to vector<8x128xf32>
      %38 = arith.mulf %33, %37 : vector<8x128xf32>
      %c0_21 = arith.constant 0 : index
      %c0_22 = arith.constant 0 : index
      %39 = vector.load %arg7[%c0_21, %c0_22] : memref<8x128xf32, #tpu.memory_space<vmem>>, vector<8x128xf32>
      tpu.vector_store %arg7[%c0_21, %c0_22], %38 {strides = array<i32>} : memref<8x128xf32, #tpu.memory_space<vmem>>, vector<8x128xf32>,
    } else {
    }
    return
  }
  func.func @transform_0(%arg0: i32, %arg1: i32) -> (i32, i32) {
    %c0_i32 = arith.constant 0 : i32
    %c0_i32_0 = arith.constant 0 : i32
    %c0_i32_1 = arith.constant 0 : i32
    return %c0_i32, %c0_i32_0 : i32, i32
  }
  func.func @transform_1(%arg0: i32, %arg1: i32) -> (i32, i32, i32) {
    %c0_i32 = arith.constant 0 : i32
    %c0_i32_0 = arith.constant 0 : i32
    return %arg1, %c0_i32, %arg0 : i32, i32, i32
  }
  func.func @transform_2(%arg0: i32, %arg1: i32) -> (i32, i32, i32) {
    %c0_i32 = arith.constant 0 : i32
    %c0_i32_0 = arith.constant 0 : i32
    return %arg1, %c0_i32, %arg0 : i32, i32, i32
  }
  func.func @transform_3(%arg0: i32, %arg1: i32) -> (i32, i32) {
    %c0_i32 = arith.constant 0 : i32
    %c0_i32_0 = arith.constant 0 : i32
    return %c0_i32, %arg0 : i32, i32
  }
  func.func @transform_4(%arg0: i32, %arg1: i32) -> (i32, i32) {
    %c0_i32 = arith.constant 0 : i32
    %c0_i32_0 = arith.constant 0 : i32
    return %c0_i32, %arg0 : i32, i32
  }
  func.func @transform_5(%arg0: i32, %arg1: i32) -> (i32, i32) {
    %c0_i32 = arith.constant 0 : i32
    %c0_i32_0 = arith.constant 0 : i32
    return %c0_i32, %arg0 : i32, i32
  }
}

</mosaic_0001>

<llo_original>
// kernel: tpu_custom_call.1
$region0: #{tpu_custom_call.1}
  #allocation0 [shape = 'u32[]', space=smem, size = 0x4, offset = 0x4, fixed_abs, tag = 'smem constant byte address 0x4 - core index']
  #allocation1 [shape = 'u32[144,128]{1,0:T(1,128)}', space=vmem, size = 0x12000, scoped, tag = 'internal scratch']
  #allocation2 [shape = 'f32[8,128]{1,0:T(8,128)}', space=vmem, size = 0x1000, scoped, tag = 'scratch operand']
  %s0 = inlined_call_operand.hbm [shape: bf16[8,64], index: 0, kind: input, shape index: {}]
  %s1 = inlined_call_operand.hbm [shape: bf16[2,64,128], index: 1, kind: input, shape index: {}]
  %s2 = inlined_call_operand.hbm [shape: f32[2,1,128], index: 2, kind: input, shape index: {}]
  %s3 = inlined_call_operand.hbm [shape: f32[8,128], index: 3, kind: input, shape index: {}]
  %s4 = inlined_call_operand.hbm [shape: f32[8,128], index: 4, kind: input, shape index: {}]
  %s5 = inlined_call_operand.hbm [shape: f32[8,128], index: 5, kind: output, shape index: {}]
  %s6 = sld [smem:[#allocation0]]
  $region85: #{tpu_custom_call.1} parent=0
    _
  %s8 = ssub.s32 1, %s6
  %s9 = scalar_select 0, %s8, %s6
  $region1: #{tpu_custom_call.1} parent=0
    #allocation3 [shape = 'u8[2048]{0}', space=vmem, size = 0x800, scoped, tag = 'input window, operand 0, single buffered']
    #allocation4 [shape = 's32[2]{0}', space=sflag, size = 0x8, scoped, tag = 'scoped memory for tpu_custom_call.1']
    #allocation5 [shape = 's32[2]{0}', space=sflag, size = 0x8, scoped, tag = 'scoped memory for tpu_custom_call.1']
    #allocation6 [shape = 'u8[32768]{0}', space=vmem, size = 0x8000, scoped, tag = 'input window, operand 1']
    #allocation7 [shape = 's32[2]{0}', space=sflag, size = 0x8, scoped, tag = 'scoped memory for tpu_custom_call.1']
    #allocation8 [shape = 'u8[1024]{0}', space=vmem, size = 0x400, scoped, tag = 'input window, operand 2']
    #allocation9 [shape = 'u8[4096]{0}', space=vmem, size = 0x1000, scoped, tag = 'input window, operand 3, single buffered']
    #allocation10 [shape = 's32[1]{0}', space=sflag, size = 0x4, scoped, tag = 'scoped memory for tpu_custom_call.1']
    #allocation11 [shape = 'u8[4096]{0}', space=vmem, size = 0x1000, scoped, tag = 'input window, operand 4, single buffered']
    #allocation12 [shape = 'u8[4096]{0}', space=vmem, size = 0x1000, scoped, tag = 'output window, operand 0, single buffered']
    %10 = vsyncpa [#allocation4], 0
    %11 = vsyncpa [#allocation7], 0
    %s12 = scalar_lea.sflag [#allocation7], 1
    %13 = vsyncpa %s12, 0
    %14 = vsyncpa [#allocation10], 0
    %15 = vsyncpa [#allocation5], 0
    loop: start=0, step=1, limit=4
    $region2: #{tpu_custom_call.1} parent=1 // loop_pre_header
      _
    $region3: #{tpu_custom_call.1} parent=1 // loop_header
      %s17 = sphi 0, %s21
      %p18 = scmp.ge.s32.totalorder %s17, 4
      %s24 = sphi 0, %s36
      %s25 = sphi 0, %s32
      %s26 = sphi 0, %s24
      %s27 = sphi 0, %s25
      %s28 = sphi 0, %s26
      %s29 = sphi 0, %s27
      %s37 = sphi 0, %s37
      %s39 = sphi 0, %s37
      %s40 = sphi 0, %s39
      %s54 = sphi 0, %s40
      %s62 = sphi 0, %s64
      %s65 = sphi 0, %s62
      %s66 = sphi 0, %s65
      %s82 = sphi 0, %s66
      %s90 = sphi 0, %s92
      %s93 = sphi 0, %s90
      %s94 = sphi 0, %s93
      %s110 = sphi 0, %s94
      %s116 = sphi 0, %s118
      %s119 = sphi 0, %s116
      %s120 = sphi 0, %s119
      %s136 = sphi 0, %s120
      %s142 = sphi 0, %s144
      %s145 = sphi 0, %s142
      %s146 = sphi 0, %s145
      %s162 = sphi 0, %s146
      %s168 = sphi 0, %s170
      %s171 = sphi 0, %s168
      %s172 = sphi 0, %s171
      %s188 = sphi 0, %s172
    $region4: #{tpu_custom_call.1} parent=1 // loop_header_branch
      %20 = sbr.rel (%p18) target = $region8
    $region5: #{tpu_custom_call.1} parent=1 // loop_body
      %s22 = ssub.s32 %s17, 1
      %s23 = ssub.s32 %s17, 2
      %s30 = sadd.s32 1, %s25
      %p31 = scmp.ge.s32.totalorder %s30, 2
      %s32 = scalar_select %p31, 0, %s30
      %s33 = sadd.s32 1, %s24
      %s34 = scalar_select %p31, %s33, %s24
      %p35 = scmp.ge.s32.totalorder %s34, 1
      %s36 = scalar_select %p35, 0, %s34
      %s38 = sadd.s32 %s37, 1
      %p41 = scmp.eq.s32.totalorder %s17, 1
      %p42 = scmp.ne.s32.totalorder %s37, %s39
      %p43 = scmp.eq.s32.totalorder %s17, 0
      %p44 = por %p42, %p43
      %p45 = scmp.ne.s32.totalorder %s37, %s39
      %p46 = scmp.eq.s32.totalorder %s22, 1
      %p47 = por %p45, %p46
      %p48 = scmp.ne.s32.totalorder %s39, %s40
      %p49 = scmp.eq.s32.totalorder %s22, 0
      %p50 = por %p48, %p49
      %p51 = scmp.ne.s32.totalorder %s39, %s40
      %p52 = scmp.eq.s32.totalorder %s23, 1
      %p53 = por %p51, %p52
      %p55 = scmp.ne.s32.totalorder %s40, %s54
      %p56 = scmp.eq.s32.totalorder %s23, 0
      %p57 = por %p55, %p56
      %s58 = ssub.s32 %s25, %s32
      %s59 = ssub.s32 %s24, %s36
      %s60 = sor.u32 %s58, %s59
      %p61 = scmp.eq.s32.totalorder %s60, 0
      %s63 = sadd.s32 %s62, 1
      %s64 = scalar_select %p61, %s62, %s63
      %p67 = pneg %p61
      %p68 = scmp.eq.s32.totalorder %s17, 1
      %p69 = por %p67, %p68
      %p70 = scmp.ne.s32.totalorder %s62, %s65
      %p71 = scmp.eq.s32.totalorder %s17, 0
      %p72 = por %p70, %p71
      %p73 = scmp.ne.s32.totalorder %s62, %s65
      %p74 = scmp.eq.s32.totalorder %s22, 1
      %p75 = por %p73, %p74
      %p76 = scmp.ne.s32.totalorder %s65, %s66
      %p77 = scmp.eq.s32.totalorder %s22, 0
      %p78 = por %p76, %p77
      %p79 = scmp.ne.s32.totalorder %s65, %s66
      %p80 = scmp.eq.s32.totalorder %s23, 1
      %p81 = por %p79, %p80
      %p83 = scmp.ne.s32.totalorder %s66, %s82
      %p84 = scmp.eq.s32.totalorder %s23, 0
      %p85 = por %p83, %p84
      %s86 = ssub.s32 %s25, %s32
      %s87 = ssub.s32 %s24, %s36
      %s88 = sor.u32 %s86, %s87
      %p89 = scmp.eq.s32.totalorder %s88, 0
      %s91 = sadd.s32 %s90, 1
      %s92 = scalar_select %p89, %s90, %s91
      %p95 = pneg %p89
      %p96 = scmp.eq.s32.totalorder %s17, 1
      %p97 = por %p95, %p96
      %p98 = scmp.ne.s32.totalorder %s90, %s93
      %p99 = scmp.eq.s32.totalorder %s17, 0
      %p100 = por %p98, %p99
      %p101 = scmp.ne.s32.totalorder %s90, %s93
      %p102 = scmp.eq.s32.totalorder %s22, 1
      %p103 = por %p101, %p102
      %p104 = scmp.ne.s32.totalorder %s93, %s94
      %p105 = scmp.eq.s32.totalorder %s22, 0
      %p106 = por %p104, %p105
      %p107 = scmp.ne.s32.totalorder %s93, %s94
      %p108 = scmp.eq.s32.totalorder %s23, 1
      %p109 = por %p107, %p108
      %p111 = scmp.ne.s32.totalorder %s94, %s110
      %p112 = scmp.eq.s32.totalorder %s23, 0
      %p113 = por %p111, %p112
      %s114 = ssub.s32 %s24, %s36
      %p115 = scmp.eq.s32.totalorder %s114, 0
      %s117 = sadd.s32 %s116, 1
      %s118 = scalar_select %p115, %s116, %s117
      %p121 = pneg %p115
      %p122 = scmp.eq.s32.totalorder %s17, 1
      %p123 = por %p121, %p122
      %p124 = scmp.ne.s32.totalorder %s116, %s119
      %p125 = scmp.eq.s32.totalorder %s17, 0
      %p126 = por %p124, %p125
      %p127 = scmp.ne.s32.totalorder %s116, %s119
      %p128 = scmp.eq.s32.totalorder %s22, 1
      %p129 = por %p127, %p128
      %p130 = scmp.ne.s32.totalorder %s119, %s120
      %p131 = scmp.eq.s32.totalorder %s22, 0
      %p132 = por %p130, %p131
      %p133 = scmp.ne.s32.totalorder %s119, %s120
      %p134 = scmp.eq.s32.totalorder %s23, 1
      %p135 = por %p133, %p134
      %p137 = scmp.ne.s32.totalorder %s120, %s136
      %p138 = scmp.eq.s32.totalorder %s23, 0
      %p139 = por %p137, %p138
      %s140 = ssub.s32 %s24, %s36
      %p141 = scmp.eq.s32.totalorder %s140, 0
      %s143 = sadd.s32 %s142, 1
      %s144 = scalar_select %p141, %s142, %s143
      %p147 = pneg %p141
      %p148 = scmp.eq.s32.totalorder %s17, 1
      %p149 = por %p147, %p148
      %p150 = scmp.ne.s32.totalorder %s142, %s145
      %p151 = scmp.eq.s32.totalorder %s17, 0
      %p152 = por %p150, %p151
      %p153 = scmp.ne.s32.totalorder %s142, %s145
      %p154 = scmp.eq.s32.totalorder %s22, 1
      %p155 = por %p153, %p154
      %p156 = scmp.ne.s32.totalorder %s145, %s146
      %p157 = scmp.eq.s32.totalorder %s22, 0
      %p158 = por %p156, %p157
      %p159 = scmp.ne.s32.totalorder %s145, %s146
      %p160 = scmp.eq.s32.totalorder %s23, 1
      %p161 = por %p159, %p160
      %p163 = scmp.ne.s32.totalorder %s146, %s162
      %p164 = scmp.eq.s32.totalorder %s23, 0
      %p165 = por %p163, %p164
      %s166 = ssub.s32 %s24, %s36
      %p167 = scmp.eq.s32.totalorder %s166, 0
      %s169 = sadd.s32 %s168, 1
      %s170 = scalar_select %p167, %s168, %s169
      %p173 = pneg %p167
      %p174 = scmp.eq.s32.totalorder %s17, 1
      %p175 = por %p173, %p174
      %p176 = scmp.ne.s32.totalorder %s168, %s171
      %p177 = scmp.eq.s32.totalorder %s17, 0
      %p178 = por %p176, %p177
      %p179 = scmp.ne.s32.totalorder %s168, %s171
      %p180 = scmp.eq.s32.totalorder %s22, 1
      %p181 = por %p179, %p180
      %p182 = scmp.ne.s32.totalorder %s171, %s172
      %p183 = scmp.eq.s32.totalorder %s22, 0
      %p184 = por %p182, %p183
      %p185 = scmp.ne.s32.totalorder %s171, %s172
      %p186 = scmp.eq.s32.totalorder %s23, 1
      %p187 = por %p185, %p186
      %p189 = scmp.ne.s32.totalorder %s172, %s188
      %p190 = scmp.eq.s32.totalorder %s23, 0
      %p191 = por %p189, %p190
      %p192 = scmp.le.s32.totalorder 1, %s17
      %p193 = scmp.lt.s32.totalorder %s17, 3
      %p194 = pnand %p192, %p193
      %p195 = pneg %p194
      // Predicated region
      $region9: #{tpu_custom_call.1} parent=5 // pred_check
        _
      $region10: #{tpu_custom_call.1} parent=5 // pred_check_branch
        %197 = sbr.rel (%p194) target = $region12
      $region11: #{tpu_custom_call.1} parent=5 // pred_region
        %s198 = ssub.s32 %s17, 1
        // Predicated region
        $region13: #{tpu_custom_call.1} parent=11 // pred_check
          %p199 = pneg %p50
        $region14: #{tpu_custom_call.1} parent=11 // pred_check_branch
          %201 = sbr.rel (%p199) target = $region16
        $region15: #{tpu_custom_call.1} parent=11 // pred_region
          %s203 = ssub.s32 64, 64
          %204 = vsyncadd [#allocation4], %s203
          %s206 = sshll.u32 [#allocation3], 4
          %s207 = int_to_ptr.vmem [resolvable:$true] %s206
          %209 = dma.hbm_to_vmem [thread:$0]  %s0, 64, %s207, [#allocation4]
        $region16: #{tpu_custom_call.1} parent=11 // pred_fallthru
          _
        // Predicated region
        $region17: #{tpu_custom_call.1} parent=11 // pred_check
          %p210 = pneg %p132
        $region18: #{tpu_custom_call.1} parent=11 // pred_check_branch
          %212 = sbr.rel (%p210) target = $region20
        $region19: #{tpu_custom_call.1} parent=11 // pred_region
          %s214 = ssub.s32 128, 128
          %215 = vsyncadd [#allocation10], %s214
          %s216 = smul.addr %s26, 128
          %s217 = scalar_lea.hbm %s3, %s216
          %s219 = sshll.u32 [#allocation9], 4
          %s220 = int_to_ptr.vmem [resolvable:$true] %s219
          %222 = dma.hbm_to_vmem [thread:$0]  %s217, 128, %s220, [#allocation10]
        $region20: #{tpu_custom_call.1} parent=11 // pred_fallthru
          _
        // Predicated region
        $region21: #{tpu_custom_call.1} parent=11 // pred_check
          %p223 = pneg %p158
        $region22: #{tpu_custom_call.1} parent=11 // pred_check_branch
          %225 = sbr.rel (%p223) target = $region24
        $region23: #{tpu_custom_call.1} parent=11 // pred_region
          %s227 = ssub.s32 128, 128
          %228 = vsyncadd [#allocation10], %s227
          %s229 = smul.addr %s26, 128
          %s230 = scalar_lea.hbm %s4, %s229
          %s232 = sshll.u32 [#allocation11], 4
          %s233 = int_to_ptr.vmem [resolvable:$true] %s232
          %235 = dma.hbm_to_vmem [thread:$0]  %s230, 128, %s233, [#allocation10]
        $region24: #{tpu_custom_call.1} parent=11 // pred_fallthru
          _
      $region12: #{tpu_custom_call.1} parent=5 // pred_fallthru
        _
      %p236 = scmp.lt.s32.totalorder %s17, 2
      // Predicated region
      $region25: #{tpu_custom_call.1} parent=5 // pred_check
        %p237 = pneg %p236
      $region26: #{tpu_custom_call.1} parent=5 // pred_check_branch
        %239 = sbr.rel (%p237) target = $region28
      $region27: #{tpu_custom_call.1} parent=5 // pred_region
        // Predicated region
        $region29: #{tpu_custom_call.1} parent=27 // pred_check
          %p240 = pneg %p72
        $region30: #{tpu_custom_call.1} parent=27 // pred_check_branch
          %242 = sbr.rel (%p240) target = $region32
        $region31: #{tpu_custom_call.1} parent=27 // pred_region
          %s243 = sand.u32 %s17, 1
          %s244 = scalar_lea.sflag [#allocation7], %s243
          %s245 = sand.u32 %s62, 1
          %s246 = smul.addr %s245, 32
          %s247 = scalar_lea.vmem [#allocation6], %s246
          %s249 = ssub.s32 512, 512
          %250 = vsyncadd %s244, %s249
          %s251 = smul.addr %s25, 8
          %s252 = sadd.s32 %s24, %s251
          %s253 = smul.addr %s252, 64
          %s254 = scalar_lea.hbm %s1, %s253
          %s255 = sshll.u32 %s247, 4
          %s256 = int_to_ptr.vmem [resolvable:$true] %s255
          %261 = dma.hbm_to_vmem [thread:$0]  %s254, 512, %s256, %s244, 64, 64, 4
        $region32: #{tpu_custom_call.1} parent=27 // pred_fallthru
          _
        // Predicated region
        $region33: #{tpu_custom_call.1} parent=27 // pred_check
          %p262 = pneg %p100
        $region34: #{tpu_custom_call.1} parent=27 // pred_check_branch
          %264 = sbr.rel (%p262) target = $region36
        $region35: #{tpu_custom_call.1} parent=27 // pred_region
          %s265 = sand.u32 %s17, 1
          %s266 = scalar_lea.sflag [#allocation7], %s265
          %s267 = sand.u32 %s90, 1
          %s268 = scalar_lea.vmem [#allocation8], %s267
          %s270 = ssub.s32 16, 16
          %271 = vsyncadd %s266, %s270
          %s272 = sadd.s32 %s24, %s25
          %s273 = smul.addr %s272, 16
          %s274 = scalar_lea.hbm %s2, %s273
          %s276 = sshll.u32 %s268, 4
          %s277 = int_to_ptr.vmem [resolvable:$true] %s276
          %279 = dma.hbm_to_vmem [thread:$0]  %s274, 16, %s277, %s266
        $region36: #{tpu_custom_call.1} parent=27 // pred_fallthru
          _
      $region28: #{tpu_custom_call.1} parent=5 // pred_fallthru
        _
      %p280 = scmp.le.s32.totalorder 1, %s17
      %p281 = scmp.lt.s32.totalorder %s17, 3
      %p282 = pnand %p280, %p281
      %p283 = pneg %p282
      // Predicated region
      $region37: #{tpu_custom_call.1} parent=5 // pred_check
        _
      $region38: #{tpu_custom_call.1} parent=5 // pred_check_branch
        %285 = sbr.rel (%p282) target = $region40
      $region39: #{tpu_custom_call.1} parent=5 // pred_region
        %s286 = ssub.s32 %s17, 1
        // Predicated region
        $region41: #{tpu_custom_call.1} parent=39 // pred_check
          %p287 = pneg %p50
        $region42: #{tpu_custom_call.1} parent=39 // pred_check_branch
          %289 = sbr.rel (%p287) target = $region44
        $region43: #{tpu_custom_call.1} parent=39 // pred_region
          %290 = dma.done [#allocation4], 64
        $region44: #{tpu_custom_call.1} parent=39 // pred_fallthru
          _
        %s291 = sand.u32 %s22, 1
        %s292 = scalar_lea.sflag [#allocation7], %s291
        %s293 = sand.u32 %s65, 1
        %s294 = smul.addr %s293, 32
        %s295 = scalar_lea.vmem [#allocation6], %s294
        // Predicated region
        $region45: #{tpu_custom_call.1} parent=39 // pred_check
          %p296 = pneg %p78
        $region46: #{tpu_custom_call.1} parent=39 // pred_check_branch
          %298 = sbr.rel (%p296) target = $region48
        $region47: #{tpu_custom_call.1} parent=39 // pred_region
          %299 = dma.done %s292, 512
        $region48: #{tpu_custom_call.1} parent=39 // pred_fallthru
          _
        %s300 = sand.u32 %s22, 1
        %s301 = scalar_lea.sflag [#allocation7], %s300
        %s302 = sand.u32 %s93, 1
        %s303 = scalar_lea.vmem [#allocation8], %s302
        // Predicated region
        $region49: #{tpu_custom_call.1} parent=39 // pred_check
          %p304 = pneg %p106
        $region50: #{tpu_custom_call.1} parent=39 // pred_check_branch
          %306 = sbr.rel (%p304) target = $region52
        $region51: #{tpu_custom_call.1} parent=39 // pred_region
          %307 = dma.done %s301, 16
        $region52: #{tpu_custom_call.1} parent=39 // pred_fallthru
          _
        // Predicated region
        $region53: #{tpu_custom_call.1} parent=39 // pred_check
          %p308 = pneg %p132
        $region54: #{tpu_custom_call.1} parent=39 // pred_check_branch
          %310 = sbr.rel (%p308) target = $region56
        $region55: #{tpu_custom_call.1} parent=39 // pred_region
          %311 = dma.done [#allocation10], 128
        $region56: #{tpu_custom_call.1} parent=39 // pred_fallthru
          _
        // Predicated region
        $region57: #{tpu_custom_call.1} parent=39 // pred_check
          %p312 = pneg %p158
        $region58: #{tpu_custom_call.1} parent=39 // pred_check_branch
          %314 = sbr.rel (%p312) target = $region60
        $region59: #{tpu_custom_call.1} parent=39 // pred_region
          %315 = dma.done [#allocation10], 128
        $region60: #{tpu_custom_call.1} parent=39 // pred_fallthru
          _
        %p316 = pneg %p50
        %p317 = pneg %p47
        %s318 = sand.u32 %s22, 1
        %s319 = scalar_lea.sflag [#allocation7], %s318
        %s320 = sand.u32 %s65, 1
        %s321 = smul.addr %s320, 32
        %s322 = scalar_lea.vmem [#allocation6], %s321
        %p323 = pneg %p78
        %p324 = pneg %p75
        %s325 = sand.u32 %s22, 1
        %s326 = scalar_lea.sflag [#allocation7], %s325
        %s327 = sand.u32 %s93, 1
        %s328 = scalar_lea.vmem [#allocation8], %s327
        %p329 = pneg %p106
        %p330 = pneg %p103
        %p331 = pneg %p132
        %p332 = pneg %p129
        %p333 = pneg %p158
        %p334 = pneg %p155
        %p335 = pneg %p184
        %p336 = pneg %p181
        %v338 = vld [vmem:[#allocation3] sm:$0xf]
        %v339 = vld [vmem:[%s295] sm:$0xf]
        %v340 = vld [vmem:[%s295 + $0x4] sm:$0xf]
        %v341 = vld [vmem:[%s295 + $0x8] sm:$0xf]
        %v342 = vld [vmem:[%s295 + $0xc] sm:$0xf]
        %v343 = vld [vmem:[%s295 + $0x10] sm:$0xf]
        %v344 = vld [vmem:[%s295 + $0x14] sm:$0xf]
        %v345 = vld [vmem:[%s295 + $0x18] sm:$0xf]
        %v346 = vld [vmem:[%s295 + $0x1c] sm:$0xf]
        %v355 = vunpack.c.l.b16 %v339
        %v356 = vunpack.c.l.b16 %v340
        %v357 = vunpack.c.l.b16 %v341
        %v358 = vunpack.c.l.b16 %v342
        %v359 = vunpack.c.l.b16 %v343
        %v360 = vunpack.c.l.b16 %v344
        %v361 = vunpack.c.l.b16 %v345
        %v362 = vunpack.c.l.b16 %v346
        %v363 = vpack.c.b16 %v356, %v355
        %v364 = vpack.c.b16 %v358, %v357
        %v365 = vpack.c.b16 %v360, %v359
        %v366 = vpack.c.b16 %v362, %v361
        %vm371 = vcmask 523264
        %v373 = vsel %vm371, %v338, 0
        %375 = vmatprep.subr.bf16.mxu0 0
        %376 = vmatpush1.bf16.msra.mxu0 %v363
        %377 = vmatprep.subr.bf16.mxu0 0
        %378 = vmatpush1.bf16.msra.mxu0 %v364
        %379 = vmatprep.subr.bf16.mxu0 0
        %380 = vmatpush1.bf16.msra.mxu0 %v365
        %381 = vmatprep.subr.bf16.mxu0 0
        %382 = vmatpush1.bf16.msra.mxu0 %v366
        %383 = vmatprep.subr.bf16.mxu0 0
        %384 = vmatpush1.bf16.msra.mxu0 0
        %385 = vmatprep.subr.bf16.mxu0 0
        %386 = vmatpush1.bf16.msra.mxu0 0
        %387 = vmatprep.subr.bf16.mxu0 0
        %388 = vmatpush1.bf16.msra.mxu0 0
        %389 = vmatprep.subr.bf16.mxu0 0
        %390 = vmatpush1.bf16.msra.mxu0 0
        %391 = vmatprep.subr.bf16.mxu0 0
        %392 = vmatpush1.bf16.msra.mxu0 0
        %393 = vmatprep.subr.bf16.mxu0 0
        %394 = vmatpush1.bf16.msra.mxu0 0
        %395 = vmatprep.subr.bf16.mxu0 0
        %396 = vmatpush1.bf16.msra.mxu0 0
        %397 = vmatprep.subr.bf16.mxu0 0
        %398 = vmatpush1.bf16.msra.mxu0 0
        %399 = vmatprep.subr.bf16.mxu0 0
        %400 = vmatpush1.bf16.msra.mxu0 0
        %401 = vmatprep.subr.bf16.mxu0 0
        %402 = vmatpush1.bf16.msra.mxu0 0
        %403 = vmatprep.subr.bf16.mxu0 0
        %404 = vmatpush1.bf16.msra.mxu0 0
        %405 = vmatprep.subr.bf16.mxu0 0
        %406 = vmatpush1.bf16.msra.mxu0 0
        %407 = vmatprep.mubr.bf16.mxu0 0
        %408 = vmatmul.mubr.bf16.gmra.mrb[0].mxu0 %v373
        %v409 = vpop.f32.mrb[0].mxu0
        %v410 = vadd.f32 0.0, %v409
        %v411 = vpop.f32.mrb[0].mxu0
        %v412 = vpop.f32.mrb[0].mxu0
        %v413 = vpop.f32.mrb[0].mxu0
        %414 = vdwg.mxu0
        %v415 = vld [vmem:[%s303] sm:$0x1]
        %v417 = vlaneseq
        %v418 = vshrl.u32 %v417, 7
        %v419 = vsub.s32 0, %v418
        %v420 = vrot.slane %v415, %v419
        %v422 = vmul.f32 %v410, %v420
        %p423 = scmp.eq.s32.totalorder %s27, 0
        // Predicated region
        $region61: #{tpu_custom_call.1} parent=39 // pred_check
          %p424 = pneg %p423
        $region62: #{tpu_custom_call.1} parent=39 // pred_check_branch
          %426 = sbr.rel (%p424) target = $region64
        $region63: #{tpu_custom_call.1} parent=39 // pred_region
          %427 = vst [vmem:[#allocation2] sm:$0xff] %v422
        $region64: #{tpu_custom_call.1} parent=39 // pred_fallthru
          _
        %p428 = scmp.ne.s32.totalorder %s27, 0
        // Predicated region
        $region65: #{tpu_custom_call.1} parent=39 // pred_check
          %p429 = pneg %p428
        $region66: #{tpu_custom_call.1} parent=39 // pred_check_branch
          %431 = sbr.rel (%p429) target = $region68
        $region67: #{tpu_custom_call.1} parent=39 // pred_region
          %v432 = vld [vmem:[#allocation2] sm:$0xff]
          %v433 = vmax.f32 %v432, %v422
          %434 = vst [vmem:[#allocation2] sm:$0xff] %v433
        $region68: #{tpu_custom_call.1} parent=39 // pred_fallthru
          _
        %p435 = scmp.eq.s32.totalorder %s27, 1
        // Predicated region
        $region69: #{tpu_custom_call.1} parent=39 // pred_check
          %p436 = pneg %p435
        $region70: #{tpu_custom_call.1} parent=39 // pred_check_branch
          %438 = sbr.rel (%p436) target = $region72
        $region71: #{tpu_custom_call.1} parent=39 // pred_region
          %v439 = vld [vmem:[#allocation2] sm:$0xff]
          %v440 = vmul.f32 %v439, %v439
          %v441 = vsub.f32 1.0, %v440
          %v442 = vrsqrt.pop %v441
          %v443 = vmul.f32 %v441, %v442
          %vm444 = vcmp.eq.f32.partialorder %v441, inf
          %v445 = vsel %vm444, %v441, %v443
          %vm446 = vcmp.eq.f32.partialorder %v441, 0.0
          %v447 = vand.u32 %v441, 2147483648
          %v448 = vsel %vm446, %v447, %v445
          %v449 = vld [vmem:[#allocation9] sm:$0xff]
          %v450 = vmul.f32 %v439, %v449
          %v451 = vld [vmem:[#allocation11] sm:$0xff]
          %v452 = vmul.f32 %v448, %v451
          %v453 = vsub.f32 %v450, %v452
          %v454 = vmul.f32 %v453, 64.0
          %v455 = vrot.slane %v454, 4
          %v456 = vmax.f32 %v454, %v455
          %v457 = vrot.slane %v456, 2
          %v458 = vmax.f32 %v456, %v457
          %v459 = vrot.slane %v458, 1
          %v460 = vmax.f32 %v458, %v459
          %v461 = vsub.f32 %v454, %v460
          %v462 = vmul.f32 %v461, 1.442695
          %v463 = vpow.pop %v462
          %v464 = vrot.slane %v463, 4
          %v465 = vadd.f32 %v463, %v464
          %v466 = vrot.slane %v465, 2
          %v467 = vadd.f32 %v465, %v466
          %v468 = vrot.slane %v467, 1
          %v469 = vadd.f32 %v467, %v468
          %v470 = vrcp.pop %v469
          %v471 = vmul.f32 %v463, %v470
          %472 = vst [vmem:[#allocation12] sm:$0xff] %v471
        $region72: #{tpu_custom_call.1} parent=39 // pred_fallthru
          _
        // Predicated region
        $region73: #{tpu_custom_call.1} parent=39 // pred_check
          %p473 = pneg %p181
        $region74: #{tpu_custom_call.1} parent=39 // pred_check_branch
          %475 = sbr.rel (%p473) target = $region76
        $region75: #{tpu_custom_call.1} parent=39 // pred_region
          %s477 = ssub.s32 128, 128
          %478 = vsyncadd [#allocation5], %s477
          %s479 = smul.addr %s26, 128
          %s480 = scalar_lea.hbm %s5, %s479
          %s482 = sshll.u32 [#allocation12], 4
          %s483 = int_to_ptr.vmem [resolvable:$true] %s482
          %485 = dma.vmem_to_hbm [thread:$0]  %s483, 128, %s480, [#allocation5]
        $region76: #{tpu_custom_call.1} parent=39 // pred_fallthru
          _
        // Predicated region
        $region77: #{tpu_custom_call.1} parent=39 // pred_check
          %p486 = pneg %p181
        $region78: #{tpu_custom_call.1} parent=39 // pred_check_branch
          %488 = sbr.rel (%p486) target = $region80
        $region79: #{tpu_custom_call.1} parent=39 // pred_region
          %489 = dma.done [#allocation5], 128
        $region80: #{tpu_custom_call.1} parent=39 // pred_fallthru
          _
      $region40: #{tpu_custom_call.1} parent=5 // pred_fallthru
        _
      %p490 = scmp.le.s32.totalorder 2, %s17
      // Predicated region
      $region81: #{tpu_custom_call.1} parent=5 // pred_check
        %p491 = pneg %p490
      $region82: #{tpu_custom_call.1} parent=5 // pred_check_branch
        %493 = sbr.rel (%p491) target = $region84
      $region83: #{tpu_custom_call.1} parent=5 // pred_region
        %s494 = ssub.s32 %s17, 2
      $region84: #{tpu_custom_call.1} parent=5 // pred_fallthru
        _
    $region6: #{tpu_custom_call.1} parent=1 // loop_footer
      %s21 = sadd.s32 1, %s17
    $region7: #{tpu_custom_call.1} parent=1 // loop_footer_branch
      %16 = sbr.rel target = $region3
    $region8: #{tpu_custom_call.1} parent=1 // loop_exit
      _
    %495 = vsyncpa [#allocation4], 1
    %s496 = scalar_lea.sflag [#allocation4], 1
    %497 = vsyncpa %s496, 1
    %498 = vsyncpa [#allocation7], 1
    %s499 = scalar_lea.sflag [#allocation7], 1
    %500 = vsyncpa %s499, 1
    %501 = vsyncpa [#allocation10], 1
    %502 = vsyncpa [#allocation5], 1
    %s503 = scalar_lea.sflag [#allocation5], 1
    %504 = vsyncpa %s503, 1

</llo_original>
